<compile_context>
chip_gen: v7x
topology: tpu7x:2x2x1
jax: 0.10.0
libtpu: 0.0.40
codegen_flags: <defaults>
</compile_context>

<pallas_src>
import jax
import jax.numpy as jnp
from jax.experimental import pallas as pl
from jax.experimental.pallas import tpu as pltpu

EPS = 1e-5
NEG_SLOPE = 0.1


def _round_up(x, m):
    return ((x + m - 1) // m) * m


def _layernorm(h, gamma, beta):
    # Two-pass form: avoids catastrophic cancellation of E[h^2] - mu^2.
    mu = jnp.mean(h, axis=-1, keepdims=True)
    d = h - mu
    var = jnp.mean(d * d, axis=-1, keepdims=True)
    return d * jax.lax.rsqrt(var + EPS) * gamma + beta


def _leaky_relu(h):
    return jnp.where(h > 0, h, NEG_SLOPE * h)


def residual_block_kernel(x_ref, w1_ref, w2_ref, vec_ref, o_ref):
    # Packed per-feature vectors, resident in VMEM across all grid steps.
    v = vec_ref[...]                       # (8, F) f32
    b1, g1, be1 = v[0], v[1], v[2]
    b2, g2, be2 = v[3], v[4], v[5]

    # Linear 1: weights pre-transposed to (in, out), bf16 operands, f32 accumulation.
    xb = x_ref[...].astype(jnp.bfloat16)
    h = jnp.dot(xb, w1_ref[...], preferred_element_type=jnp.float32) + b1
    # LayerNorm 1 + LeakyReLU(0.1)
    h = _leaky_relu(_layernorm(h, g1, be1))
    # Dropout(0.1) -> identity in eval mode.
    # Linear 2
    h = jnp.dot(h.astype(jnp.bfloat16), w2_ref[...],
                preferred_element_type=jnp.float32) + b2
    # LayerNorm 2
    h = _layernorm(h, g2, be2)
    # Residual add (re-read x from the ref) + LeakyReLU(0.1)
    o_ref[...] = _leaky_relu(x_ref[...].astype(jnp.float32) + h).astype(o_ref.dtype)


def prepare_params(params):
    """One-time parameter prep (hoist out of the per-call path):
    transpose weights to (in, out), cast to bf16, pack the six (1,F) vectors
    into a single (8,F) f32 block."""
    w1, b1, g1, be1, w2, b2, g2, be2 = params
    F = w1.shape[0]
    w1t = jnp.asarray(w1).T.astype(jnp.bfloat16)
    w2t = jnp.asarray(w2).T.astype(jnp.bfloat16)
    rows = jnp.concatenate(
        [jnp.reshape(r, (1, F)).astype(jnp.float32)
         for r in (b1, g1, be1, b2, g2, be2)], axis=0)        # (6, F)
    vecs = jnp.zeros((8, F), jnp.float32).at[:6].set(rows)    # sublane-padded block
    return w1t, w2t, vecs


def _select_tile(B, block_b):
    """Pick a batch-tile size: multiple of 8 rows, <= block_b, and (when B allows)
    at least 2 grid steps so the v7x 2-TC split via 'parallel' semantics engages."""
    block_b = max(8, _round_up(block_b, 8))
    b8 = _round_up(B, 8)
    if b8 >= 2 * block_b:
        return block_b
    if b8 >= 16:
        return _round_up(pl.cdiv(b8, 2), 8)   # two roughly equal tiles
    return b8


def residual_block(x, prepared, *, block_b=512):
    w1t, w2t, vecs = prepared
    B, F = x.shape

    TB = _select_tile(B, block_b)
    Bp = _round_up(B, TB)
    grid = (Bp // TB,)

    # Pad ragged batches instead of silently falling back to a single giant tile.
    if Bp != B:
        x_in = jnp.zeros((Bp, F), x.dtype).at[:B].set(x)
    else:
        x_in = x

    row = lambda i: (i, 0)      # batch-tiled blocks
    const = lambda i: (0, 0)    # grid-invariant (resident) blocks

    # Explicit VMEM budget: x/out double-buffered f32 tiles, single-buffered bf16
    # weights + packed vectors, plus headroom for f32 intermediates. Clamped so a
    # tiling tuned here stays inside v7x's 64 MiB VMEM.
    tile_bytes = TB * F * 4
    pipeline_bytes = 2 * 2 * tile_bytes               # x + out, 2 buffers each
    resident_bytes = 2 * F * F * 2 + 8 * F * 4        # bf16 weights (x1) + vectors
    scratch_bytes = 3 * tile_bytes                    # h intermediates / casts
    vmem_limit = int(1.5 * (pipeline_bytes + resident_bytes + scratch_bytes))
    vmem_limit = min(56 * 1024 * 1024, max(32 * 1024 * 1024, vmem_limit))

    out = pl.pallas_call(
        residual_block_kernel,
        out_shape=jax.ShapeDtypeStruct((Bp, F), x.dtype),
        grid=grid,
        in_specs=[
            pl.BlockSpec((TB, F), row),                                   # x tile
            pl.BlockSpec((F, F), const, pipeline_mode=pl.Buffered(1)),    # W1^T bf16
            pl.BlockSpec((F, F), const, pipeline_mode=pl.Buffered(1)),    # W2^T bf16
            pl.BlockSpec((8, F), const, pipeline_mode=pl.Buffered(1)),    # packed vecs
        ],
        out_specs=pl.BlockSpec((TB, F), row),
        compiler_params=pltpu.CompilerParams(
            dimension_semantics=("parallel",),   # 2x on v7x (2 TCs); no-op v5e/v6e
            vmem_limit_bytes=vmem_limit,
        ),
    )(x_in, w1t, w2t, vecs)

    return out[:B] if Bp != B else out


def init_params(key, features):
    k1, k2, k3, k4 = jax.random.split(key, 4)
    bound = 1.0 / jnp.sqrt(features)
    w1 = jax.random.uniform(k1, (features, features), jnp.float32, -bound, bound)
    b1 = jax.random.uniform(k2, (1, features), jnp.float32, -bound, bound)
    w2 = jax.random.uniform(k3, (features, features), jnp.float32, -bound, bound)
    b2 = jax.random.uniform(k4, (1, features), jnp.float32, -bound, bound)
    g1 = jnp.ones((1, features), jnp.float32)
    be1 = jnp.zeros((1, features), jnp.float32)
    g2 = jnp.ones((1, features), jnp.float32)
    be2 = jnp.zeros((1, features), jnp.float32)
    return (w1, b1, g1, be1, w2, b2, g2, be2)


def residual_block_ref(x, params):
    """Pure-JAX f32 reference (PyTorch eval-mode semantics)."""
    w1, b1, g1, be1, w2, b2, g2, be2 = params

    def ln(h, g, b):
        mu = jnp.mean(h, axis=-1, keepdims=True)
        var = jnp.mean((h - mu) ** 2, axis=-1, keepdims=True)
        return (h - mu) / jnp.sqrt(var + EPS) * g + b

    lrelu = lambda h: jnp.where(h > 0, h, NEG_SLOPE * h)
    h = x @ w1.T + b1
    h = lrelu(ln(h, g1, be1))
    h = h @ w2.T + b2
    h = ln(h, g2, be2)
    return lrelu(x + h)


if __name__ == "__main__":
    key = jax.random.PRNGKey(0)
    kx, kp = jax.random.split(key)
    # Lane-dense feature dim; batch chosen NOT divisible by the tile to exercise the
    # padded, 2-step-grid path (both TCs used on v7x, result sliced back to B rows).
    B, F = 200, 128
    x = jax.random.normal(kx, (B, F), dtype=jnp.float32)
    params = init_params(kp, F)

    # One-time weight transpose/cast + vector packing, hoisted out of the call path.
    prepared = prepare_params(params)

    out = jax.block_until_ready(residual_block(x, prepared))

    ref = residual_block_ref(x, params)
    assert out.shape == (B, F)
    # bf16 MXU operands with f32 accumulation -> relaxed tolerance vs the f32 reference.
    assert jnp.allclose(out, ref, atol=5e-2, rtol=5e-2), (
        "mismatch vs JAX reference, max abs err = "
        f"{float(jnp.max(jnp.abs(out - ref)))}"
    )
    print("KERNEL_OK")
</pallas_src>

<mosaic_0001>
module attributes {stable_mosaic.version = 11 : i64} {
  func.func @residual_block_kernel(%arg0: i32, %arg1: memref<104x128xf32, #tpu.memory_space<vmem>>, %arg2: memref<128x128xbf16, #tpu.memory_space<vmem>>, %arg3: memref<128x128xbf16, #tpu.memory_space<vmem>>, %arg4: memref<8x128xf32, #tpu.memory_space<vmem>>, %arg5: memref<104x128xf32, #tpu.memory_space<vmem>>) attributes {dimension_semantics = [#tpu.dimension_semantics<parallel>], iteration_bounds = array<i64: 2>, scalar_prefetch = 0 : i64, scratch_operands = 0 : i64, tpu.core_type = #tpu.core_type<tc>, window_params = [{transform_indices = @transform_0, window_bounds = array<i64: 104, 128>}, {pipeline_mode = #tpu.pipeline_mode<synchronous>, transform_indices = @transform_1, window_bounds = array<i64: 128, 128>}, {pipeline_mode = #tpu.pipeline_mode<synchronous>, transform_indices = @transform_2, window_bounds = array<i64: 128, 128>}, {pipeline_mode = #tpu.pipeline_mode<synchronous>, transform_indices = @transform_3, window_bounds = array<i64: 8, 128>}, {transform_indices = @transform_4, window_bounds = array<i64: 104, 128>}]} {
    %c0 = arith.constant 0 : index
    %c0_0 = arith.constant 0 : index
    %0 = vector.load %arg4[%c0, %c0_0] : memref<8x128xf32, #tpu.memory_space<vmem>>, vector<8x128xf32>
    %1 = vector.extract_strided_slice %0 {offsets = [0, 0], sizes = [1, 128], strides = [1, 1]} : vector<8x128xf32> to vector<1x128xf32>
    %2 = vector.shape_cast %1 : vector<1x128xf32> to vector<128xf32>
    %3 = vector.extract_strided_slice %0 {offsets = [1, 0], sizes = [1, 128], strides = [1, 1]} : vector<8x128xf32> to vector<1x128xf32>
    %4 = vector.shape_cast %3 : vector<1x128xf32> to vector<128xf32>
    %5 = vector.extract_strided_slice %0 {offsets = [2, 0], sizes = [1, 128], strides = [1, 1]} : vector<8x128xf32> to vector<1x128xf32>
    %6 = vector.shape_cast %5 : vector<1x128xf32> to vector<128xf32>
    %7 = vector.extract_strided_slice %0 {offsets = [3, 0], sizes = [1, 128], strides = [1, 1]} : vector<8x128xf32> to vector<1x128xf32>
    %8 = vector.shape_cast %7 : vector<1x128xf32> to vector<128xf32>
    %9 = vector.extract_strided_slice %0 {offsets = [4, 0], sizes = [1, 128], strides = [1, 1]} : vector<8x128xf32> to vector<1x128xf32>
    %10 = vector.shape_cast %9 : vector<1x128xf32> to vector<128xf32>
    %11 = vector.extract_strided_slice %0 {offsets = [5, 0], sizes = [1, 128], strides = [1, 1]} : vector<8x128xf32> to vector<1x128xf32>
    %12 = vector.shape_cast %11 : vector<1x128xf32> to vector<128xf32>
    %c0_1 = arith.constant 0 : index
    %c0_2 = arith.constant 0 : index
    %13 = vector.load %arg1[%c0_1, %c0_2] : memref<104x128xf32, #tpu.memory_space<vmem>>, vector<104x128xf32>
    %14 = arith.truncf %13 : vector<104x128xf32> to vector<104x128xbf16>
    %c0_3 = arith.constant 0 : index
    %c0_4 = arith.constant 0 : index
    %15 = vector.load %arg2[%c0_3, %c0_4] : memref<128x128xbf16, #tpu.memory_space<vmem>>, vector<128x128xbf16>
    %cst = arith.constant dense<0.000000e+00> : vector<104x128xf32>
    %16 = tpu.matmul %14, %15, %cst {dimension_numbers = #tpu.dot_dimension_numbers<[1], [0], [0], [1], [0, 0, 1, 1], [], []>} : vector<104x128xbf16>, vector<128x128xbf16>, vector<104x128xf32> -> vector<104x128xf32>
    %17 = vector.shape_cast %2 : vector<128xf32> to vector<1x128xf32>
    %18 = vector.broadcast %17 : vector<1x128xf32> to vector<104x128xf32>
    %19 = arith.addf %16, %18 : vector<104x128xf32>
    %cst_5 = arith.constant dense<0.000000e+00> : vector<104xf32>
    %20 = vector.multi_reduction <add>, %19, %cst_5 [1] : vector<104x128xf32> to vector<104xf32>
    %21 = vector.shape_cast %20 : vector<104xf32> to vector<104x1xf32>
    %cst_6 = arith.constant 1.280000e+02 : f32
    %22 = vector.broadcast %cst_6 : f32 to vector<104x1xf32>
    %23 = arith.divf %21, %22 : vector<104x1xf32>
    %24 = vector.broadcast %23 : vector<104x1xf32> to vector<104x128xf32>
    %25 = arith.subf %19, %24 : vector<104x128xf32>
    %26 = arith.mulf %25, %25 : vector<104x128xf32>
    %cst_7 = arith.constant dense<0.000000e+00> : vector<104xf32>
    %27 = vector.multi_reduction <add>, %26, %cst_7 [1] : vector<104x128xf32> to vector<104xf32>
    %28 = vector.shape_cast %27 : vector<104xf32> to vector<104x1xf32>
    %cst_8 = arith.constant 1.280000e+02 : f32
    %29 = vector.broadcast %cst_8 : f32 to vector<104x1xf32>
    %30 = arith.divf %28, %29 : vector<104x1xf32>
    %cst_9 = arith.constant 9.99999974E-6 : f32
    %31 = vector.broadcast %cst_9 : f32 to vector<104x1xf32>
    %32 = arith.addf %30, %31 : vector<104x1xf32>
    %33 = math.rsqrt %32 : vector<104x1xf32>
    %34 = vector.broadcast %33 : vector<104x1xf32> to vector<104x128xf32>
    %35 = arith.mulf %25, %34 : vector<104x128xf32>
    %36 = vector.shape_cast %4 : vector<128xf32> to vector<1x128xf32>
    %37 = vector.broadcast %36 : vector<1x128xf32> to vector<104x128xf32>
    %38 = arith.mulf %35, %37 : vector<104x128xf32>
    %39 = vector.shape_cast %6 : vector<128xf32> to vector<1x128xf32>
    %40 = vector.broadcast %39 : vector<1x128xf32> to vector<104x128xf32>
    %41 = arith.addf %38, %40 : vector<104x128xf32>
    %cst_10 = arith.constant 0.000000e+00 : f32
    %42 = vector.broadcast %cst_10 : f32 to vector<104x128xf32>
    %43 = arith.cmpf ogt, %41, %42 : vector<104x128xf32>
    %cst_11 = arith.constant 1.000000e-01 : f32
    %44 = vector.broadcast %cst_11 : f32 to vector<104x128xf32>
    %45 = arith.mulf %44, %41 : vector<104x128xf32>
    %46 = arith.select %43, %41, %45 : vector<104x128xi1>, vector<104x128xf32>
    %47 = arith.truncf %46 : vector<104x128xf32> to vector<104x128xbf16>
    %c0_12 = arith.constant 0 : index
    %c0_13 = arith.constant 0 : index
    %48 = vector.load %arg3[%c0_12, %c0_13] : memref<128x128xbf16, #tpu.memory_space<vmem>>, vector<128x128xbf16>
    %cst_14 = arith.constant dense<0.000000e+00> : vector<104x128xf32>
    %49 = tpu.matmul %47, %48, %cst_14 {dimension_numbers = #tpu.dot_dimension_numbers<[1], [0], [0], [1], [0, 0, 1, 1], [], []>} : vector<104x128xbf16>, vector<128x128xbf16>, vector<104x128xf32> -> vector<104x128xf32>
    %50 = vector.shape_cast %8 : vector<128xf32> to vector<1x128xf32>
    %51 = vector.broadcast %50 : vector<1x128xf32> to vector<104x128xf32>
    %52 = arith.addf %49, %51 : vector<104x128xf32>
    %cst_15 = arith.constant dense<0.000000e+00> : vector<104xf32>
    %53 = vector.multi_reduction <add>, %52, %cst_15 [1] : vector<104x128xf32> to vector<104xf32>
    %54 = vector.shape_cast %53 : vector<104xf32> to vector<104x1xf32>
    %cst_16 = arith.constant 1.280000e+02 : f32
    %55 = vector.broadcast %cst_16 : f32 to vector<104x1xf32>
    %56 = arith.divf %54, %55 : vector<104x1xf32>
    %57 = vector.broadcast %56 : vector<104x1xf32> to vector<104x128xf32>
    %58 = arith.subf %52, %57 : vector<104x128xf32>
    %59 = arith.mulf %58, %58 : vector<104x128xf32>
    %cst_17 = arith.constant dense<0.000000e+00> : vector<104xf32>
    %60 = vector.multi_reduction <add>, %59, %cst_17 [1] : vector<104x128xf32> to vector<104xf32>
    %61 = vector.shape_cast %60 : vector<104xf32> to vector<104x1xf32>
    %cst_18 = arith.constant 1.280000e+02 : f32
    %62 = vector.broadcast %cst_18 : f32 to vector<104x1xf32>
    %63 = arith.divf %61, %62 : vector<104x1xf32>
    %cst_19 = arith.constant 9.99999974E-6 : f32
    %64 = vector.broadcast %cst_19 : f32 to vector<104x1xf32>
    %65 = arith.addf %63, %64 : vector<104x1xf32>
    %66 = math.rsqrt %65 : vector<104x1xf32>
    %67 = vector.broadcast %66 : vector<104x1xf32> to vector<104x128xf32>
    %68 = arith.mulf %58, %67 : vector<104x128xf32>
    %69 = vector.shape_cast %10 : vector<128xf32> to vector<1x128xf32>
    %70 = vector.broadcast %69 : vector<1x128xf32> to vector<104x128xf32>
    %71 = arith.mulf %68, %70 : vector<104x128xf32>
    %72 = vector.shape_cast %12 : vector<128xf32> to vector<1x128xf32>
    %73 = vector.broadcast %72 : vector<1x128xf32> to vector<104x128xf32>
    %74 = arith.addf %71, %73 : vector<104x128xf32>
    %c0_20 = arith.constant 0 : index
    %c0_21 = arith.constant 0 : index
    %75 = vector.load %arg1[%c0_20, %c0_21] : memref<104x128xf32, #tpu.memory_space<vmem>>, vector<104x128xf32>
    %76 = arith.addf %75, %74 : vector<104x128xf32>
    %cst_22 = arith.constant 0.000000e+00 : f32
    %77 = vector.broadcast %cst_22 : f32 to vector<104x128xf32>
    %78 = arith.cmpf ogt, %76, %77 : vector<104x128xf32>
    %cst_23 = arith.constant 1.000000e-01 : f32
    %79 = vector.broadcast %cst_23 : f32 to vector<104x128xf32>
    %80 = arith.mulf %79, %76 : vector<104x128xf32>
    %81 = arith.select %78, %76, %80 : vector<104x128xi1>, vector<104x128xf32>
    %c0_24 = arith.constant 0 : index
    %c0_25 = arith.constant 0 : index
    %82 = vector.load %arg5[%c0_24, %c0_25] : memref<104x128xf32, #tpu.memory_space<vmem>>, vector<104x128xf32>
    tpu.vector_store %arg5[%c0_24, %c0_25], %81 {strides = array<i32>} : memref<104x128xf32, #tpu.memory_space<vmem>>, vector<104x128xf32>,
    return
  }
  func.func @transform_0(%arg0: i32) -> (i32, i32) {
    %c0_i32 = arith.constant 0 : i32
    %c0_i32_0 = arith.constant 0 : i32
    return %arg0, %c0_i32 : i32, i32
  }
  func.func @transform_1(%arg0: i32) -> (i32, i32) {
    %c0_i32 = arith.constant 0 : i32
    %c0_i32_0 = arith.constant 0 : i32
    %c0_i32_1 = arith.constant 0 : i32
    return %c0_i32, %c0_i32_0 : i32, i32
  }
  func.func @transform_2(%arg0: i32) -> (i32, i32) {
    %c0_i32 = arith.constant 0 : i32
    %c0_i32_0 = arith.constant 0 : i32
    %c0_i32_1 = arith.constant 0 : i32
    return %c0_i32, %c0_i32_0 : i32, i32
  }
  func.func @transform_3(%arg0: i32) -> (i32, i32) {
    %c0_i32 = arith.constant 0 : i32
    %c0_i32_0 = arith.constant 0 : i32
    %c0_i32_1 = arith.constant 0 : i32
    return %c0_i32, %c0_i32_0 : i32, i32
  }
  func.func @transform_4(%arg0: i32) -> (i32, i32) {
    %c0_i32 = arith.constant 0 : i32
    %c0_i32_0 = arith.constant 0 : i32
    return %arg0, %c0_i32 : i32, i32
  }
}

</mosaic_0001>

<llo_original>
// kernel: tpu_custom_call.1
$region0: #{tpu_custom_call.1}
  #allocation0 [shape = 'u32[]', space=smem, size = 0x4, offset = 0x4, fixed_abs, tag = 'smem constant byte address 0x4 - core index']
  #allocation1 [shape = 'u32[144,128]{1,0:T(1,128)}', space=vmem, size = 0x12000, scoped, tag = 'internal scratch']
  %s0 = inlined_call_operand.hbm [shape: f32[208,128], index: 0, kind: input, shape index: {}]
  %s1 = inlined_call_operand.hbm [shape: bf16[128,128], index: 1, kind: input, shape index: {}]
  %s2 = inlined_call_operand.hbm [shape: bf16[128,128], index: 2, kind: input, shape index: {}]
  %s3 = inlined_call_operand.vmem [shape: f32[8,128], index: 3, kind: input, shape index: {}]
  %s4 = inlined_call_operand.hbm [shape: f32[208,128], index: 4, kind: output, shape index: {}]
  %s5 = sld [smem:[#allocation0]]
  $region61: #{tpu_custom_call.1} parent=0
    _
  %s7 = ssub.s32 1, %s5
  %s8 = scalar_select 0, %s7, %s5
  $region1: #{tpu_custom_call.1} parent=0
    #allocation2 [shape = 'u8[106496]{0}', space=vmem, size = 0x1a000, scoped, tag = 'input window, operand 0']
    #allocation3 [shape = 's32[2]{0}', space=sflag, size = 0x8, scoped, tag = 'scoped memory for tpu_custom_call.1']
    #allocation4 [shape = 's32[2]{0}', space=sflag, size = 0x8, scoped, tag = 'scoped memory for tpu_custom_call.1']
    #allocation5 [shape = 'u8[32768]{0}', space=vmem, size = 0x8000, scoped, tag = 'input window, operand 1, single buffered']
    #allocation6 [shape = 's32[1]{0}', space=sflag, size = 0x4, scoped, tag = 'scoped memory for tpu_custom_call.1']
    #allocation7 [shape = 'u8[32768]{0}', space=vmem, size = 0x8000, scoped, tag = 'input window, operand 2, single buffered']
    #allocation8 [shape = 'u8[106496]{0}', space=vmem, size = 0x1a000, scoped, tag = 'output window, operand 0']
    %9 = vsyncpa [#allocation3], 0
    %s10 = scalar_lea.sflag [#allocation3], 1
    %11 = vsyncpa %s10, 0
    %12 = vsyncpa [#allocation6], 0
    %13 = vsyncpa [#allocation4], 0
    %s14 = scalar_lea.sflag [#allocation4], 1
    %15 = vsyncpa %s14, 0
    loop: start=0, step=1, limit=4
    $region2: #{tpu_custom_call.1} parent=1 // loop_pre_header
      _
    $region3: #{tpu_custom_call.1} parent=1 // loop_header
      %s17 = sphi 0, %s21
      %p18 = scmp.ge.s32.totalorder %s17, 4
      %s27 = sphi 0, %s29
      %s30 = sphi 0, %s27
      %s31 = sphi 0, %s30
      %s47 = sphi 0, %s31
      %s51 = sphi 0, %s51
      %s53 = sphi 0, %s51
      %s54 = sphi 0, %s53
      %s68 = sphi 0, %s54
      %s72 = sphi 0, %s72
      %s74 = sphi 0, %s72
      %s75 = sphi 0, %s74
      %s89 = sphi 0, %s75
      %s93 = sphi 0, %s93
      %s95 = sphi 0, %s93
      %s96 = sphi 0, %s95
      %s110 = sphi 0, %s96
      %s116 = sphi 0, %s118
      %s119 = sphi 0, %s116
      %s120 = sphi 0, %s119
      %s136 = sphi 0, %s120
    $region4: #{tpu_custom_call.1} parent=1 // loop_header_branch
      %20 = sbr.rel (%p18) target = $region8
    $region5: #{tpu_custom_call.1} parent=1 // loop_body
      %s22 = ssub.s32 %s17, 1
      %s23 = ssub.s32 %s17, 2
      %s24 = sadd.s32 %s17, 1
      %s25 = ssub.s32 %s17, %s24
      %p26 = scmp.eq.s32.totalorder %s25, 0
      %s28 = sadd.s32 %s27, 1
      %s29 = scalar_select %p26, %s27, %s28
      %p32 = pneg %p26
      %p33 = scmp.eq.s32.totalorder %s17, 1
      %p34 = por %p32, %p33
      %p35 = scmp.ne.s32.totalorder %s27, %s30
      %p36 = scmp.eq.s32.totalorder %s17, 0
      %p37 = por %p35, %p36
      %p38 = scmp.ne.s32.totalorder %s27, %s30
      %p39 = scmp.eq.s32.totalorder %s22, 1
      %p40 = por %p38, %p39
      %p41 = scmp.ne.s32.totalorder %s30, %s31
      %p42 = scmp.eq.s32.totalorder %s22, 0
      %p43 = por %p41, %p42
      %p44 = scmp.ne.s32.totalorder %s30, %s31
      %p45 = scmp.eq.s32.totalorder %s23, 1
      %p46 = por %p44, %p45
      %p48 = scmp.ne.s32.totalorder %s31, %s47
      %p49 = scmp.eq.s32.totalorder %s23, 0
      %p50 = por %p48, %p49
      %s52 = sadd.s32 %s51, 1
      %p55 = scmp.eq.s32.totalorder %s17, 1
      %p56 = scmp.ne.s32.totalorder %s51, %s53
      %p57 = scmp.eq.s32.totalorder %s17, 0
      %p58 = por %p56, %p57
      %p59 = scmp.ne.s32.totalorder %s51, %s53
      %p60 = scmp.eq.s32.totalorder %s22, 1
      %p61 = por %p59, %p60
      %p62 = scmp.ne.s32.totalorder %s53, %s54
      %p63 = scmp.eq.s32.totalorder %s22, 0
      %p64 = por %p62, %p63
      %p65 = scmp.ne.s32.totalorder %s53, %s54
      %p66 = scmp.eq.s32.totalorder %s23, 1
      %p67 = por %p65, %p66
      %p69 = scmp.ne.s32.totalorder %s54, %s68
      %p70 = scmp.eq.s32.totalorder %s23, 0
      %p71 = por %p69, %p70
      %s73 = sadd.s32 %s72, 1
      %p76 = scmp.eq.s32.totalorder %s17, 1
      %p77 = scmp.ne.s32.totalorder %s72, %s74
      %p78 = scmp.eq.s32.totalorder %s17, 0
      %p79 = por %p77, %p78
      %p80 = scmp.ne.s32.totalorder %s72, %s74
      %p81 = scmp.eq.s32.totalorder %s22, 1
      %p82 = por %p80, %p81
      %p83 = scmp.ne.s32.totalorder %s74, %s75
      %p84 = scmp.eq.s32.totalorder %s22, 0
      %p85 = por %p83, %p84
      %p86 = scmp.ne.s32.totalorder %s74, %s75
      %p87 = scmp.eq.s32.totalorder %s23, 1
      %p88 = por %p86, %p87
      %p90 = scmp.ne.s32.totalorder %s75, %s89
      %p91 = scmp.eq.s32.totalorder %s23, 0
      %p92 = por %p90, %p91
      %s94 = sadd.s32 %s93, 1
      %p97 = scmp.eq.s32.totalorder %s17, 1
      %p98 = scmp.ne.s32.totalorder %s93, %s95
      %p99 = scmp.eq.s32.totalorder %s17, 0
      %p100 = por %p98, %p99
      %p101 = scmp.ne.s32.totalorder %s93, %s95
      %p102 = scmp.eq.s32.totalorder %s22, 1
      %p103 = por %p101, %p102
      %p104 = scmp.ne.s32.totalorder %s95, %s96
      %p105 = scmp.eq.s32.totalorder %s22, 0
      %p106 = por %p104, %p105
      %p107 = scmp.ne.s32.totalorder %s95, %s96
      %p108 = scmp.eq.s32.totalorder %s23, 1
      %p109 = por %p107, %p108
      %p111 = scmp.ne.s32.totalorder %s96, %s110
      %p112 = scmp.eq.s32.totalorder %s23, 0
      %p113 = por %p111, %p112
      %s114 = ssub.s32 %s17, %s24
      %p115 = scmp.eq.s32.totalorder %s114, 0
      %s117 = sadd.s32 %s116, 1
      %s118 = scalar_select %p115, %s116, %s117
      %p121 = pneg %p115
      %p122 = scmp.eq.s32.totalorder %s17, 1
      %p123 = por %p121, %p122
      %p124 = scmp.ne.s32.totalorder %s116, %s119
      %p125 = scmp.eq.s32.totalorder %s17, 0
      %p126 = por %p124, %p125
      %p127 = scmp.ne.s32.totalorder %s116, %s119
      %p128 = scmp.eq.s32.totalorder %s22, 1
      %p129 = por %p127, %p128
      %p130 = scmp.ne.s32.totalorder %s119, %s120
      %p131 = scmp.eq.s32.totalorder %s22, 0
      %p132 = por %p130, %p131
      %p133 = scmp.ne.s32.totalorder %s119, %s120
      %p134 = scmp.eq.s32.totalorder %s23, 1
      %p135 = por %p133, %p134
      %p137 = scmp.ne.s32.totalorder %s120, %s136
      %p138 = scmp.eq.s32.totalorder %s23, 0
      %p139 = por %p137, %p138
      %p140 = scmp.le.s32.totalorder 1, %s17
      %p141 = scmp.lt.s32.totalorder %s17, 3
      %p142 = pnand %p140, %p141
      %p143 = pneg %p142
      // Predicated region
      $region9: #{tpu_custom_call.1} parent=5 // pred_check
        _
      $region10: #{tpu_custom_call.1} parent=5 // pred_check_branch
        %145 = sbr.rel (%p142) target = $region12
      $region11: #{tpu_custom_call.1} parent=5 // pred_region
        %s146 = ssub.s32 %s17, 1
        // Predicated region
        $region13: #{tpu_custom_call.1} parent=11 // pred_check
          %p147 = pneg %p64
        $region14: #{tpu_custom_call.1} parent=11 // pred_check_branch
          %149 = sbr.rel (%p147) target = $region16
        $region15: #{tpu_custom_call.1} parent=11 // pred_region
          %s151 = ssub.s32 1024, 1024
          %152 = vsyncadd [#allocation6], %s151
          %s153 = sshll.u32 [#allocation5], 4
          %s154 = int_to_ptr.vmem [resolvable:$true] %s153
          %159 = dma.hbm_to_vmem [thread:$0]  %s1, 1024, %s154, [#allocation6], 64, 64, 4
        $region16: #{tpu_custom_call.1} parent=11 // pred_fallthru
          _
        // Predicated region
        $region17: #{tpu_custom_call.1} parent=11 // pred_check
          %p160 = pneg %p85
        $region18: #{tpu_custom_call.1} parent=11 // pred_check_branch
          %162 = sbr.rel (%p160) target = $region20
        $region19: #{tpu_custom_call.1} parent=11 // pred_region
          %s164 = ssub.s32 1024, 1024
          %165 = vsyncadd [#allocation6], %s164
          %s166 = sshll.u32 [#allocation7], 4
          %s167 = int_to_ptr.vmem [resolvable:$true] %s166
          %172 = dma.hbm_to_vmem [thread:$0]  %s2, 1024, %s167, [#allocation6], 64, 64, 4
        $region20: #{tpu_custom_call.1} parent=11 // pred_fallthru
          _
        // Predicated region
        $region21: #{tpu_custom_call.1} parent=11 // pred_check
          %p173 = pneg %p106
        $region22: #{tpu_custom_call.1} parent=11 // pred_check_branch
          %175 = sbr.rel (%p173) target = $region24
        $region23: #{tpu_custom_call.1} parent=11 // pred_region
          _
        $region24: #{tpu_custom_call.1} parent=11 // pred_fallthru
          _
      $region12: #{tpu_custom_call.1} parent=5 // pred_fallthru
        _
      %p176 = scmp.lt.s32.totalorder %s17, 2
      // Predicated region
      $region25: #{tpu_custom_call.1} parent=5 // pred_check
        %p177 = pneg %p176
      $region26: #{tpu_custom_call.1} parent=5 // pred_check_branch
        %179 = sbr.rel (%p177) target = $region28
      $region27: #{tpu_custom_call.1} parent=5 // pred_region
        // Predicated region
        $region29: #{tpu_custom_call.1} parent=27 // pred_check
          %p180 = pneg %p37
        $region30: #{tpu_custom_call.1} parent=27 // pred_check_branch
          %182 = sbr.rel (%p180) target = $region32
        $region31: #{tpu_custom_call.1} parent=27 // pred_region
          %s183 = sand.u32 %s27, 1
          %s184 = scalar_lea.sflag [#allocation3], %s183
          %s185 = sand.u32 %s27, 1
          %s186 = smul.addr %s185, 104
          %s187 = scalar_lea.vmem [#allocation2], %s186
          %s188 = smul.u32 13, %s17
          %s190 = ssub.s32 1664, 1664
          %191 = vsyncadd %s184, %s190
          %s192 = smul.addr %s188, 128
          %s193 = scalar_lea.hbm %s0, %s192
          %s194 = sshll.u32 %s187, 4
          %s195 = int_to_ptr.vmem [resolvable:$true] %s194
          %200 = dma.hbm_to_vmem [thread:$0]  %s193, 1664, %s195, %s184, 128, 128, 8
        $region32: #{tpu_custom_call.1} parent=27 // pred_fallthru
          _
      $region28: #{tpu_custom_call.1} parent=5 // pred_fallthru
        _
      %p201 = scmp.le.s32.totalorder 1, %s17
      %p202 = scmp.lt.s32.totalorder %s17, 3
      %p203 = pnand %p201, %p202
      %p204 = pneg %p203
      // Predicated region
      $region33: #{tpu_custom_call.1} parent=5 // pred_check
        _
      $region34: #{tpu_custom_call.1} parent=5 // pred_check_branch
        %206 = sbr.rel (%p203) target = $region36
      $region35: #{tpu_custom_call.1} parent=5 // pred_region
        %s207 = ssub.s32 %s17, 1
        %s208 = sand.u32 %s30, 1
        %s209 = scalar_lea.sflag [#allocation3], %s208
        %s210 = sand.u32 %s30, 1
        %s211 = smul.addr %s210, 104
        %s212 = scalar_lea.vmem [#allocation2], %s211
        // Predicated region
        $region37: #{tpu_custom_call.1} parent=35 // pred_check
          %p213 = pneg %p43
        $region38: #{tpu_custom_call.1} parent=35 // pred_check_branch
          %215 = sbr.rel (%p213) target = $region40
        $region39: #{tpu_custom_call.1} parent=35 // pred_region
          %216 = dma.done %s209, 1664
        $region40: #{tpu_custom_call.1} parent=35 // pred_fallthru
          _
        // Predicated region
        $region41: #{tpu_custom_call.1} parent=35 // pred_check
          %p217 = pneg %p64
        $region42: #{tpu_custom_call.1} parent=35 // pred_check_branch
          %219 = sbr.rel (%p217) target = $region44
        $region43: #{tpu_custom_call.1} parent=35 // pred_region
          %220 = dma.done [#allocation6], 1024
        $region44: #{tpu_custom_call.1} parent=35 // pred_fallthru
          _
        // Predicated region
        $region45: #{tpu_custom_call.1} parent=35 // pred_check
          %p221 = pneg %p85
        $region46: #{tpu_custom_call.1} parent=35 // pred_check_branch
          %223 = sbr.rel (%p221) target = $region48
        $region47: #{tpu_custom_call.1} parent=35 // pred_region
          %224 = dma.done [#allocation6], 1024
        $region48: #{tpu_custom_call.1} parent=35 // pred_fallthru
          _
        %s225 = sand.u32 %s30, 1
        %s226 = scalar_lea.sflag [#allocation3], %s225
        %s227 = sand.u32 %s30, 1
        %s228 = smul.addr %s227, 104
        %s229 = scalar_lea.vmem [#allocation2], %s228
        %p230 = pneg %p43
        %p231 = pneg %p40
        %p232 = pneg %p64
        %p233 = pneg %p61
        %p234 = pneg %p85
        %p235 = pneg %p82
        %p236 = pneg %p106
        %p237 = pneg %p103
        %p238 = pneg %p132
        %p239 = pneg %p129
        %s240 = sand.u32 %s119, 1
        %s241 = scalar_lea.sflag [#allocation4], %s240
        %s242 = sand.u32 %s119, 1
        %s243 = smul.addr %s242, 104
        %s244 = scalar_lea.vmem [#allocation8], %s243
        %s245 = smul.u32 13, %s22
        %s246 = smul.u32 13, %s22
        %v248 = vld [vmem:[%s3] sm:$0xff]
        %v249 = vld [vmem:[%s212] sm:$0xff]
        %v250 = vld [vmem:[%s212 + $0x8] sm:$0xff]
        %v251 = vld [vmem:[%s212 + $0x10] sm:$0xff]
        %v252 = vld [vmem:[%s212 + $0x18] sm:$0xff]
        %v253 = vld [vmem:[%s212 + $0x20] sm:$0xff]
        %v254 = vld [vmem:[%s212 + $0x28] sm:$0xff]
        %v255 = vld [vmem:[%s212 + $0x30] sm:$0xff]
        %v256 = vld [vmem:[%s212 + $0x38] sm:$0xff]
        %v257 = vld [vmem:[%s212 + $0x40] sm:$0xff]
        %v258 = vld [vmem:[%s212 + $0x48] sm:$0xff]
        %v259 = vld [vmem:[%s212 + $0x50] sm:$0xff]
        %v260 = vld [vmem:[%s212 + $0x58] sm:$0xff]
        %v261 = vld [vmem:[%s212 + $0x60] sm:$0xff]
        %v262 = vpack.c.bf16 %v250, %v249
        %v263 = vpack.c.bf16 %v252, %v251
        %v264 = vpack.c.bf16 %v254, %v253
        %v265 = vpack.c.bf16 %v256, %v255
        %v266 = vpack.c.bf16 %v258, %v257
        %v267 = vpack.c.bf16 %v260, %v259
        %v268 = vpack.c.bf16 %v261, %v261
        %v269 = vld [vmem:[#allocation5] sm:$0xf]
        %v270 = vld [vmem:[#allocation5 + $0x4] sm:$0xf]
        %v271 = vld [vmem:[#allocation5 + $0x8] sm:$0xf]
        %v272 = vld [vmem:[#allocation5 + $0xc] sm:$0xf]
        %v273 = vld [vmem:[#allocation5 + $0x10] sm:$0xf]
        %v274 = vld [vmem:[#allocation5 + $0x14] sm:$0xf]
        %v275 = vld [vmem:[#allocation5 + $0x18] sm:$0xf]
        %v276 = vld [vmem:[#allocation5 + $0x1c] sm:$0xf]
        %v277 = vld [vmem:[#allocation5 + $0x20] sm:$0xf]
        %v278 = vld [vmem:[#allocation5 + $0x24] sm:$0xf]
        %v279 = vld [vmem:[#allocation5 + $0x28] sm:$0xf]
        %v280 = vld [vmem:[#allocation5 + $0x2c] sm:$0xf]
        %v281 = vld [vmem:[#allocation5 + $0x30] sm:$0xf]
        %v282 = vld [vmem:[#allocation5 + $0x34] sm:$0xf]
        %v283 = vld [vmem:[#allocation5 + $0x38] sm:$0xf]
        %v284 = vld [vmem:[#allocation5 + $0x3c] sm:$0xf]
        %v285 = vlaneseq
        %v286 = vshrl.u32 %v285, 7
        %v287 = vsub.s32 0, %v286
        %v288 = vrot.slane %v248, %v287
        %v305 = vunpack.c.l.b16 %v269
        %v306 = vunpack.c.l.b16 %v270
        %v307 = vunpack.c.l.b16 %v271
        %v308 = vunpack.c.l.b16 %v272
        %v309 = vunpack.c.l.b16 %v273
        %v310 = vunpack.c.l.b16 %v274
        %v311 = vunpack.c.l.b16 %v275
        %v312 = vunpack.c.l.b16 %v276
        %v313 = vunpack.c.l.b16 %v277
        %v314 = vunpack.c.l.b16 %v278
        %v315 = vunpack.c.l.b16 %v279
        %v316 = vunpack.c.l.b16 %v280
        %v317 = vunpack.c.l.b16 %v281
        %v318 = vunpack.c.l.b16 %v282
        %v319 = vunpack.c.l.b16 %v283
        %v320 = vunpack.c.l.b16 %v284
        %v321 = vpack.c.b16 %v306, %v305
        %v322 = vpack.c.b16 %v308, %v307
        %v323 = vpack.c.b16 %v310, %v309
        %v324 = vpack.c.b16 %v312, %v311
        %v325 = vpack.c.b16 %v314, %v313
        %v326 = vpack.c.b16 %v316, %v315
        %v327 = vpack.c.b16 %v318, %v317
        %v328 = vpack.c.b16 %v320, %v319
        %337 = vmatprep.subr.bf16.mxu0 0
        %338 = vmatpush1.bf16.msra.mxu0 %v321
        %339 = vmatprep.subr.bf16.mxu0 0
        %340 = vmatpush1.bf16.msra.mxu0 %v322
        %341 = vmatprep.subr.bf16.mxu0 0
        %342 = vmatpush1.bf16.msra.mxu0 %v323
        %343 = vmatprep.subr.bf16.mxu0 0
        %344 = vmatpush1.bf16.msra.mxu0 %v324
        %345 = vmatprep.subr.bf16.mxu0 0
        %346 = vmatpush1.bf16.msra.mxu0 %v325
        %347 = vmatprep.subr.bf16.mxu0 0
        %348 = vmatpush1.bf16.msra.mxu0 %v326
        %349 = vmatprep.subr.bf16.mxu0 0
        %350 = vmatpush1.bf16.msra.mxu0 %v327
        %351 = vmatprep.subr.bf16.mxu0 0
        %352 = vmatpush1.bf16.msra.mxu0 %v328
        %353 = vmatprep.subr.bf16.mxu0 0
        %354 = vmatpush1.bf16.msra.mxu0 0
        %355 = vmatprep.subr.bf16.mxu0 0
        %356 = vmatpush1.bf16.msra.mxu0 0
        %357 = vmatprep.subr.bf16.mxu0 0
        %358 = vmatpush1.bf16.msra.mxu0 0
        %359 = vmatprep.subr.bf16.mxu0 0
        %360 = vmatpush1.bf16.msra.mxu0 0
        %361 = vmatprep.subr.bf16.mxu0 0
        %362 = vmatpush1.bf16.msra.mxu0 0
        %363 = vmatprep.subr.bf16.mxu0 0
        %364 = vmatpush1.bf16.msra.mxu0 0
        %365 = vmatprep.subr.bf16.mxu0 0
        %366 = vmatpush1.bf16.msra.mxu0 0
        %367 = vmatprep.subr.bf16.mxu0 0
        %368 = vmatpush1.bf16.msra.mxu0 0
        %369 = vmatprep.mubr.bf16.mxu0 0
        %370 = vmatmul.mubr.bf16.gmra.mrb[0].mxu0 %v262
        %v371 = vpop.f32.mrb[0].mxu0
        %v372 = vadd.f32 %v288, %v371
        %v373 = vpop.f32.mrb[0].mxu0
        %v374 = vpop.f32.mrb[0].mxu0
        %v375 = vadd.f32 %v288, %v374
        %v376 = vpop.f32.mrb[0].mxu0
        %377 = vmatprep.mubr.bf16.mxu0 0
        %378 = vmatmul.mubr.bf16.gmra.mrb[0].mxu0 %v263
        %v379 = vpop.f32.mrb[0].mxu0
        %v380 = vadd.f32 %v288, %v379
        %v381 = vpop.f32.mrb[0].mxu0
        %v382 = vpop.f32.mrb[0].mxu0
        %v383 = vadd.f32 %v288, %v382
        %v384 = vpop.f32.mrb[0].mxu0
        %385 = vmatprep.mubr.bf16.mxu0 0
        %386 = vmatmul.mubr.bf16.gmra.mrb[0].mxu0 %v264
        %v387 = vpop.f32.mrb[0].mxu0
        %v388 = vadd.f32 %v288, %v387
        %v389 = vpop.f32.mrb[0].mxu0
        %v390 = vpop.f32.mrb[0].mxu0
        %v391 = vadd.f32 %v288, %v390
        %v392 = vpop.f32.mrb[0].mxu0
        %393 = vmatprep.mubr.bf16.mxu0 0
        %394 = vmatmul.mubr.bf16.gmra.mrb[0].mxu0 %v265
        %v395 = vpop.f32.mrb[0].mxu0
        %v396 = vadd.f32 %v288, %v395
        %v397 = vpop.f32.mrb[0].mxu0
        %v398 = vpop.f32.mrb[0].mxu0
        %v399 = vadd.f32 %v288, %v398
        %v400 = vpop.f32.mrb[0].mxu0
        %401 = vmatprep.mubr.bf16.mxu0 0
        %402 = vmatmul.mubr.bf16.gmra.mrb[0].mxu0 %v266
        %v403 = vpop.f32.mrb[0].mxu0
        %v404 = vadd.f32 %v288, %v403
        %v405 = vpop.f32.mrb[0].mxu0
        %v406 = vpop.f32.mrb[0].mxu0
        %v407 = vadd.f32 %v288, %v406
        %v408 = vpop.f32.mrb[0].mxu0
        %409 = vmatprep.mubr.bf16.mxu0 0
        %410 = vmatmul.mubr.bf16.gmra.mrb[0].mxu0 %v267
        %v411 = vpop.f32.mrb[0].mxu0
        %v412 = vadd.f32 %v288, %v411
        %v413 = vpop.f32.mrb[0].mxu0
        %v414 = vpop.f32.mrb[0].mxu0
        %v415 = vadd.f32 %v288, %v414
        %v416 = vpop.f32.mrb[0].mxu0
        %417 = vmatprep.mubr.bf16.mxu0 0
        %418 = vmatmul.mubr.bf16.gmra.mrb[0].mxu0 %v268
        %v419 = vpop.f32.mrb[0].mxu0
        %v420 = vadd.f32 %v288, %v419
        %v421 = vpop.f32.mrb[0].mxu0
        %v422 = vpop.f32.mrb[0].mxu0
        %v423 = vpop.f32.mrb[0].mxu0
        %424 = vdwg.mxu0
        %425 = vadd.xlane.f32.xlu0 %v372
        %v426 = vpop.xlane.xlu0 %425
        %427 = vadd.xlane.f32.xlu0 %v375
        %v428 = vpop.xlane.xlu0 %427
        %429 = vadd.xlane.f32.xlu0 %v380
        %v430 = vpop.xlane.xlu0 %429
        %431 = vadd.xlane.f32.xlu0 %v383
        %v432 = vpop.xlane.xlu0 %431
        %433 = vadd.xlane.f32.xlu0 %v388
        %v434 = vpop.xlane.xlu0 %433
        %435 = vadd.xlane.f32.xlu0 %v391
        %v436 = vpop.xlane.xlu0 %435
        %437 = vadd.xlane.f32.xlu0 %v396
        %v438 = vpop.xlane.xlu0 %437
        %439 = vadd.xlane.f32.xlu0 %v399
        %v440 = vpop.xlane.xlu0 %439
        %441 = vadd.xlane.f32.xlu0 %v404
        %v442 = vpop.xlane.xlu0 %441
        %443 = vadd.xlane.f32.xlu0 %v407
        %v444 = vpop.xlane.xlu0 %443
        %445 = vadd.xlane.f32.xlu0 %v412
        %v446 = vpop.xlane.xlu0 %445
        %447 = vadd.xlane.f32.xlu0 %v415
        %v448 = vpop.xlane.xlu0 %447
        %449 = vadd.xlane.f32.xlu0 %v420
        %v450 = vpop.xlane.xlu0 %449
        %v451 = vrcp.pop 128.0
        %v452 = vmul.f32 %v426, %v451
        %v453 = vmul.f32 %v428, %v451
        %v454 = vmul.f32 %v430, %v451
        %v455 = vmul.f32 %v432, %v451
        %v456 = vmul.f32 %v434, %v451
        %v457 = vmul.f32 %v436, %v451
        %v458 = vmul.f32 %v438, %v451
        %v459 = vmul.f32 %v440, %v451
        %v460 = vmul.f32 %v442, %v451
        %v461 = vmul.f32 %v444, %v451
        %v462 = vmul.f32 %v446, %v451
        %v463 = vmul.f32 %v448, %v451
        %v464 = vmul.f32 %v450, %v451
        %v465 = vsub.f32 %v372, %v452
        %v466 = vsub.f32 %v375, %v453
        %v467 = vsub.f32 %v380, %v454
        %v468 = vsub.f32 %v383, %v455
        %v469 = vsub.f32 %v388, %v456
        %v470 = vsub.f32 %v391, %v457
        %v471 = vsub.f32 %v396, %v458
        %v472 = vsub.f32 %v399, %v459
        %v473 = vsub.f32 %v404, %v460
        %v474 = vsub.f32 %v407, %v461
        %v475 = vsub.f32 %v412, %v462
        %v476 = vsub.f32 %v415, %v463
        %v477 = vsub.f32 %v420, %v464
        %v478 = vmul.f32 %v465, %v465
        %v479 = vmul.f32 %v466, %v466
        %v480 = vmul.f32 %v467, %v467
        %v481 = vmul.f32 %v468, %v468
        %v482 = vmul.f32 %v469, %v469
        %v483 = vmul.f32 %v470, %v470
        %v484 = vmul.f32 %v471, %v471
        %v485 = vmul.f32 %v472, %v472
        %v486 = vmul.f32 %v473, %v473
        %v487 = vmul.f32 %v474, %v474
        %v488 = vmul.f32 %v475, %v475
        %v489 = vmul.f32 %v476, %v476
        %v490 = vmul.f32 %v477, %v477
        %491 = vadd.xlane.f32.xlu0 %v478
        %v492 = vpop.xlane.xlu0 %491
        %493 = vadd.xlane.f32.xlu0 %v479
        %v494 = vpop.xlane.xlu0 %493
        %495 = vadd.xlane.f32.xlu0 %v480
        %v496 = vpop.xlane.xlu0 %495
        %497 = vadd.xlane.f32.xlu0 %v481
        %v498 = vpop.xlane.xlu0 %497
        %499 = vadd.xlane.f32.xlu0 %v482
        %v500 = vpop.xlane.xlu0 %499
        %501 = vadd.xlane.f32.xlu0 %v483
        %v502 = vpop.xlane.xlu0 %501
        %503 = vadd.xlane.f32.xlu0 %v484
        %v504 = vpop.xlane.xlu0 %503
        %505 = vadd.xlane.f32.xlu0 %v485
        %v506 = vpop.xlane.xlu0 %505
        %507 = vadd.xlane.f32.xlu0 %v486
        %v508 = vpop.xlane.xlu0 %507
        %509 = vadd.xlane.f32.xlu0 %v487
        %v510 = vpop.xlane.xlu0 %509
        %511 = vadd.xlane.f32.xlu0 %v488
        %v512 = vpop.xlane.xlu0 %511
        %513 = vadd.xlane.f32.xlu0 %v489
        %v514 = vpop.xlane.xlu0 %513
        %515 = vadd.xlane.f32.xlu0 %v490
        %v516 = vpop.xlane.xlu0 %515
        %v517 = vmul.f32 %v492, %v451
        %v518 = vmul.f32 %v494, %v451
        %v519 = vmul.f32 %v496, %v451
        %v520 = vmul.f32 %v498, %v451
        %v521 = vmul.f32 %v500, %v451
        %v522 = vmul.f32 %v502, %v451
        %v523 = vmul.f32 %v504, %v451
        %v524 = vmul.f32 %v506, %v451
        %v525 = vmul.f32 %v508, %v451
        %v526 = vmul.f32 %v510, %v451
        %v527 = vmul.f32 %v512, %v451
        %v528 = vmul.f32 %v514, %v451
        %v529 = vmul.f32 %v516, %v451
        %v530 = vadd.f32 %v517, 1e-05
        %v531 = vadd.f32 %v518, 1e-05
        %v532 = vadd.f32 %v519, 1e-05
        %v533 = vadd.f32 %v520, 1e-05
        %v534 = vadd.f32 %v521, 1e-05
        %v535 = vadd.f32 %v522, 1e-05
        %v536 = vadd.f32 %v523, 1e-05
        %v537 = vadd.f32 %v524, 1e-05
        %v538 = vadd.f32 %v525, 1e-05
        %v539 = vadd.f32 %v526, 1e-05
        %v540 = vadd.f32 %v527, 1e-05
        %v541 = vadd.f32 %v528, 1e-05
        %v542 = vadd.f32 %v529, 1e-05
        %v543 = vrsqrt.pop %v530
        %v544 = vrsqrt.pop %v531
        %v545 = vrsqrt.pop %v532
        %v546 = vrsqrt.pop %v533
        %v547 = vrsqrt.pop %v534
        %v548 = vrsqrt.pop %v535
        %v549 = vrsqrt.pop %v536
        %v550 = vrsqrt.pop %v537
        %v551 = vrsqrt.pop %v538
        %v552 = vrsqrt.pop %v539
        %v553 = vrsqrt.pop %v540
        %v554 = vrsqrt.pop %v541
        %v555 = vrsqrt.pop %v542
        %v556 = vmul.f32 %v465, %v543
        %v557 = vmul.f32 %v466, %v544
        %v558 = vmul.f32 %v467, %v545
        %v559 = vmul.f32 %v468, %v546
        %v560 = vmul.f32 %v469, %v547
        %v561 = vmul.f32 %v470, %v548
        %v562 = vmul.f32 %v471, %v549
        %v563 = vmul.f32 %v472, %v550
        %v564 = vmul.f32 %v473, %v551
        %v565 = vmul.f32 %v474, %v552
        %v566 = vmul.f32 %v475, %v553
        %v567 = vmul.f32 %v476, %v554
        %v568 = vmul.f32 %v477, %v555
        %v569 = vlaneseq
        %v570 = vshrl.u32 %v569, 7
        %v571 = vsub.s32 1, %v570
        %v572 = vrot.slane %v248, %v571
        %v573 = vmul.f32 %v556, %v572
        %v574 = vmul.f32 %v557, %v572
        %v575 = vmul.f32 %v558, %v572
        %v576 = vmul.f32 %v559, %v572
        %v577 = vmul.f32 %v560, %v572
        %v578 = vmul.f32 %v561, %v572
        %v579 = vmul.f32 %v562, %v572
        %v580 = vmul.f32 %v563, %v572
        %v581 = vmul.f32 %v564, %v572
        %v582 = vmul.f32 %v565, %v572
        %v583 = vmul.f32 %v566, %v572
        %v584 = vmul.f32 %v567, %v572
        %v585 = vmul.f32 %v568, %v572
        %v586 = vlaneseq
        %v587 = vshrl.u32 %v586, 7
        %v588 = vsub.s32 2, %v587
        %v589 = vrot.slane %v248, %v588
        %v590 = vadd.f32 %v573, %v589
        %v591 = vadd.f32 %v574, %v589
        %v592 = vadd.f32 %v575, %v589
        %v593 = vadd.f32 %v576, %v589
        %v594 = vadd.f32 %v577, %v589
        %v595 = vadd.f32 %v578, %v589
        %v596 = vadd.f32 %v579, %v589
        %v597 = vadd.f32 %v580, %v589
        %v598 = vadd.f32 %v581, %v589
        %v599 = vadd.f32 %v582, %v589
        %v600 = vadd.f32 %v583, %v589
        %v601 = vadd.f32 %v584, %v589
        %v602 = vadd.f32 %v585, %v589
        %vm603 = vcmp.gt.f32.partialorder %v590, 0.0
        %vm604 = vcmp.gt.f32.partialorder %v591, 0.0
        %vm605 = vcmp.gt.f32.partialorder %v592, 0.0
        %vm606 = vcmp.gt.f32.partialorder %v593, 0.0
        %vm607 = vcmp.gt.f32.partialorder %v594, 0.0
        %vm608 = vcmp.gt.f32.partialorder %v595, 0.0
        %vm609 = vcmp.gt.f32.partialorder %v596, 0.0
        %vm610 = vcmp.gt.f32.partialorder %v597, 0.0
        %vm611 = vcmp.gt.f32.partialorder %v598, 0.0
        %vm612 = vcmp.gt.f32.partialorder %v599, 0.0
        %vm613 = vcmp.gt.f32.partialorder %v600, 0.0
        %vm614 = vcmp.gt.f32.partialorder %v601, 0.0
        %vm615 = vcmp.gt.f32.partialorder %v602, 0.0
        %v616 = vmul.f32 %v590, 0.1
        %v617 = vmul.f32 %v591, 0.1
        %v618 = vmul.f32 %v592, 0.1
        %v619 = vmul.f32 %v593, 0.1
        %v620 = vmul.f32 %v594, 0.1
        %v621 = vmul.f32 %v595, 0.1
        %v622 = vmul.f32 %v596, 0.1
        %v623 = vmul.f32 %v597, 0.1
        %v624 = vmul.f32 %v598, 0.1
        %v625 = vmul.f32 %v599, 0.1
        %v626 = vmul.f32 %v600, 0.1
        %v627 = vmul.f32 %v601, 0.1
        %v628 = vmul.f32 %v602, 0.1
        %v629 = vsel %vm603, %v590, %v616
        %v630 = vsel %vm604, %v591, %v617
        %v631 = vsel %vm605, %v592, %v618
        %v632 = vsel %vm606, %v593, %v619
        %v633 = vsel %vm607, %v594, %v620
        %v634 = vsel %vm608, %v595, %v621
        %v635 = vsel %vm609, %v596, %v622
        %v636 = vsel %vm610, %v597, %v623
        %v637 = vsel %vm611, %v598, %v624
        %v638 = vsel %vm612, %v599, %v625
        %v639 = vsel %vm613, %v600, %v626
        %v640 = vsel %vm614, %v601, %v627
        %v641 = vsel %vm615, %v602, %v628
        %v642 = vpack.c.bf16 %v630, %v629
        %v643 = vpack.c.bf16 %v632, %v631
        %v644 = vpack.c.bf16 %v634, %v633
        %v645 = vpack.c.bf16 %v636, %v635
        %v646 = vpack.c.bf16 %v638, %v637
        %v647 = vpack.c.bf16 %v640, %v639
        %v648 = vpack.c.bf16 %v641, %v641
        %v649 = vld [vmem:[#allocation7] sm:$0xf]
        %v650 = vld [vmem:[#allocation7 + $0x4] sm:$0xf]
        %v651 = vld [vmem:[#allocation7 + $0x8] sm:$0xf]
        %v652 = vld [vmem:[#allocation7 + $0xc] sm:$0xf]
        %v653 = vld [vmem:[#allocation7 + $0x10] sm:$0xf]
        %v654 = vld [vmem:[#allocation7 + $0x14] sm:$0xf]
        %v655 = vld [vmem:[#allocation7 + $0x18] sm:$0xf]
        %v656 = vld [vmem:[#allocation7 + $0x1c] sm:$0xf]
        %v657 = vld [vmem:[#allocation7 + $0x20] sm:$0xf]
        %v658 = vld [vmem:[#allocation7 + $0x24] sm:$0xf]
        %v659 = vld [vmem:[#allocation7 + $0x28] sm:$0xf]
        %v660 = vld [vmem:[#allocation7 + $0x2c] sm:$0xf]
        %v661 = vld [vmem:[#allocation7 + $0x30] sm:$0xf]
        %v662 = vld [vmem:[#allocation7 + $0x34] sm:$0xf]
        %v663 = vld [vmem:[#allocation7 + $0x38] sm:$0xf]
        %v664 = vld [vmem:[#allocation7 + $0x3c] sm:$0xf]
        %v665 = vlaneseq
        %v666 = vshrl.u32 %v665, 7
        %v667 = vsub.s32 3, %v666
        %v668 = vrot.slane %v248, %v667
        %v685 = vunpack.c.l.b16 %v649
        %v686 = vunpack.c.l.b16 %v650
        %v687 = vunpack.c.l.b16 %v651
        %v688 = vunpack.c.l.b16 %v652
        %v689 = vunpack.c.l.b16 %v653
        %v690 = vunpack.c.l.b16 %v654
        %v691 = vunpack.c.l.b16 %v655
        %v692 = vunpack.c.l.b16 %v656
        %v693 = vunpack.c.l.b16 %v657
        %v694 = vunpack.c.l.b16 %v658
        %v695 = vunpack.c.l.b16 %v659
        %v696 = vunpack.c.l.b16 %v660
        %v697 = vunpack.c.l.b16 %v661
        %v698 = vunpack.c.l.b16 %v662
        %v699 = vunpack.c.l.b16 %v663
        %v700 = vunpack.c.l.b16 %v664
        %v701 = vpack.c.b16 %v686, %v685
        %v702 = vpack.c.b16 %v688, %v687
        %v703 = vpack.c.b16 %v690, %v689
        %v704 = vpack.c.b16 %v692, %v691
        %v705 = vpack.c.b16 %v694, %v693
        %v706 = vpack.c.b16 %v696, %v695
        %v707 = vpack.c.b16 %v698, %v697
        %v708 = vpack.c.b16 %v700, %v699
        %717 = vmatprep.subr.bf16.mxu0 0
        %718 = vmatpush1.bf16.msra.mxu0 %v701
        %719 = vmatprep.subr.bf16.mxu0 0
        %720 = vmatpush1.bf16.msra.mxu0 %v702
        %721 = vmatprep.subr.bf16.mxu0 0
        %722 = vmatpush1.bf16.msra.mxu0 %v703
        %723 = vmatprep.subr.bf16.mxu0 0
        %724 = vmatpush1.bf16.msra.mxu0 %v704
        %725 = vmatprep.subr.bf16.mxu0 0
        %726 = vmatpush1.bf16.msra.mxu0 %v705
        %727 = vmatprep.subr.bf16.mxu0 0
        %728 = vmatpush1.bf16.msra.mxu0 %v706
        %729 = vmatprep.subr.bf16.mxu0 0
        %730 = vmatpush1.bf16.msra.mxu0 %v707
        %731 = vmatprep.subr.bf16.mxu0 0
        %732 = vmatpush1.bf16.msra.mxu0 %v708
        %733 = vmatprep.subr.bf16.mxu0 0
        %734 = vmatpush1.bf16.msra.mxu0 0
        %735 = vmatprep.subr.bf16.mxu0 0
        %736 = vmatpush1.bf16.msra.mxu0 0
        %737 = vmatprep.subr.bf16.mxu0 0
        %738 = vmatpush1.bf16.msra.mxu0 0
        %739 = vmatprep.subr.bf16.mxu0 0
        %740 = vmatpush1.bf16.msra.mxu0 0
        %741 = vmatprep.subr.bf16.mxu0 0
        %742 = vmatpush1.bf16.msra.mxu0 0
        %743 = vmatprep.subr.bf16.mxu0 0
        %744 = vmatpush1.bf16.msra.mxu0 0
        %745 = vmatprep.subr.bf16.mxu0 0
        %746 = vmatpush1.bf16.msra.mxu0 0
        %747 = vmatprep.subr.bf16.mxu0 0
        %748 = vmatpush1.bf16.msra.mxu0 0
        %749 = vmatprep.mubr.bf16.mxu0 0
        %750 = vmatmul.mubr.bf16.gmra.mrb[0].mxu0 %v642
        %v751 = vpop.f32.mrb[0].mxu0
        %v752 = vadd.f32 %v668, %v751
        %v753 = vpop.f32.mrb[0].mxu0
        %v754 = vpop.f32.mrb[0].mxu0
        %v755 = vadd.f32 %v668, %v754
        %v756 = vpop.f32.mrb[0].mxu0
        %757 = vmatprep.mubr.bf16.mxu0 0
        %758 = vmatmul.mubr.bf16.gmra.mrb[0].mxu0 %v643
        %v759 = vpop.f32.mrb[0].mxu0
        %v760 = vadd.f32 %v668, %v759
        %v761 = vpop.f32.mrb[0].mxu0
        %v762 = vpop.f32.mrb[0].mxu0
        %v763 = vadd.f32 %v668, %v762
        %v764 = vpop.f32.mrb[0].mxu0
        %765 = vmatprep.mubr.bf16.mxu0 0
        %766 = vmatmul.mubr.bf16.gmra.mrb[0].mxu0 %v644
        %v767 = vpop.f32.mrb[0].mxu0
        %v768 = vadd.f32 %v668, %v767
        %v769 = vpop.f32.mrb[0].mxu0
        %v770 = vpop.f32.mrb[0].mxu0
        %v771 = vadd.f32 %v668, %v770
        %v772 = vpop.f32.mrb[0].mxu0
        %773 = vmatprep.mubr.bf16.mxu0 0
        %774 = vmatmul.mubr.bf16.gmra.mrb[0].mxu0 %v645
        %v775 = vpop.f32.mrb[0].mxu0
        %v776 = vadd.f32 %v668, %v775
        %v777 = vpop.f32.mrb[0].mxu0
        %v778 = vpop.f32.mrb[0].mxu0
        %v779 = vadd.f32 %v668, %v778
        %v780 = vpop.f32.mrb[0].mxu0
        %781 = vmatprep.mubr.bf16.mxu0 0
        %782 = vmatmul.mubr.bf16.gmra.mrb[0].mxu0 %v646
        %v783 = vpop.f32.mrb[0].mxu0
        %v784 = vadd.f32 %v668, %v783
        %v785 = vpop.f32.mrb[0].mxu0
        %v786 = vpop.f32.mrb[0].mxu0
        %v787 = vadd.f32 %v668, %v786
        %v788 = vpop.f32.mrb[0].mxu0
        %789 = vmatprep.mubr.bf16.mxu0 0
        %790 = vmatmul.mubr.bf16.gmra.mrb[0].mxu0 %v647
        %v791 = vpop.f32.mrb[0].mxu0
        %v792 = vadd.f32 %v668, %v791
        %v793 = vpop.f32.mrb[0].mxu0
        %v794 = vpop.f32.mrb[0].mxu0
        %v795 = vadd.f32 %v668, %v794
        %v796 = vpop.f32.mrb[0].mxu0
        %797 = vmatprep.mubr.bf16.mxu0 0
        %798 = vmatmul.mubr.bf16.gmra.mrb[0].mxu0 %v648
        %v799 = vpop.f32.mrb[0].mxu0
        %v800 = vadd.f32 %v668, %v799
        %v801 = vpop.f32.mrb[0].mxu0
        %v802 = vpop.f32.mrb[0].mxu0
        %v803 = vpop.f32.mrb[0].mxu0
        %804 = vdwg.mxu0
        %805 = vadd.xlane.f32.xlu0 %v752
        %v806 = vpop.xlane.xlu0 %805
        %807 = vadd.xlane.f32.xlu0 %v755
        %v808 = vpop.xlane.xlu0 %807
        %809 = vadd.xlane.f32.xlu0 %v760
        %v810 = vpop.xlane.xlu0 %809
        %811 = vadd.xlane.f32.xlu0 %v763
        %v812 = vpop.xlane.xlu0 %811
        %813 = vadd.xlane.f32.xlu0 %v768
        %v814 = vpop.xlane.xlu0 %813
        %815 = vadd.xlane.f32.xlu0 %v771
        %v816 = vpop.xlane.xlu0 %815
        %817 = vadd.xlane.f32.xlu0 %v776
        %v818 = vpop.xlane.xlu0 %817
        %819 = vadd.xlane.f32.xlu0 %v779
        %v820 = vpop.xlane.xlu0 %819
        %821 = vadd.xlane.f32.xlu0 %v784
        %v822 = vpop.xlane.xlu0 %821
        %823 = vadd.xlane.f32.xlu0 %v787
        %v824 = vpop.xlane.xlu0 %823
        %825 = vadd.xlane.f32.xlu0 %v792
        %v826 = vpop.xlane.xlu0 %825
        %827 = vadd.xlane.f32.xlu0 %v795
        %v828 = vpop.xlane.xlu0 %827
        %829 = vadd.xlane.f32.xlu0 %v800
        %v830 = vpop.xlane.xlu0 %829
        %v831 = vmul.f32 %v806, %v451
        %v832 = vmul.f32 %v808, %v451
        %v833 = vmul.f32 %v810, %v451
        %v834 = vmul.f32 %v812, %v451
        %v835 = vmul.f32 %v814, %v451
        %v836 = vmul.f32 %v816, %v451
        %v837 = vmul.f32 %v818, %v451
        %v838 = vmul.f32 %v820, %v451
        %v839 = vmul.f32 %v822, %v451
        %v840 = vmul.f32 %v824, %v451
        %v841 = vmul.f32 %v826, %v451
        %v842 = vmul.f32 %v828, %v451
        %v843 = vmul.f32 %v830, %v451
        %v844 = vsub.f32 %v752, %v831
        %v845 = vsub.f32 %v755, %v832
        %v846 = vsub.f32 %v760, %v833
        %v847 = vsub.f32 %v763, %v834
        %v848 = vsub.f32 %v768, %v835
        %v849 = vsub.f32 %v771, %v836
        %v850 = vsub.f32 %v776, %v837
        %v851 = vsub.f32 %v779, %v838
        %v852 = vsub.f32 %v784, %v839
        %v853 = vsub.f32 %v787, %v840
        %v854 = vsub.f32 %v792, %v841
        %v855 = vsub.f32 %v795, %v842
        %v856 = vsub.f32 %v800, %v843
        %v857 = vmul.f32 %v844, %v844
        %v858 = vmul.f32 %v845, %v845
        %v859 = vmul.f32 %v846, %v846
        %v860 = vmul.f32 %v847, %v847
        %v861 = vmul.f32 %v848, %v848
        %v862 = vmul.f32 %v849, %v849
        %v863 = vmul.f32 %v850, %v850
        %v864 = vmul.f32 %v851, %v851
        %v865 = vmul.f32 %v852, %v852
        %v866 = vmul.f32 %v853, %v853
        %v867 = vmul.f32 %v854, %v854
        %v868 = vmul.f32 %v855, %v855
        %v869 = vmul.f32 %v856, %v856
        %870 = vadd.xlane.f32.xlu0 %v857
        %v871 = vpop.xlane.xlu0 %870
        %872 = vadd.xlane.f32.xlu0 %v858
        %v873 = vpop.xlane.xlu0 %872
        %874 = vadd.xlane.f32.xlu0 %v859
        %v875 = vpop.xlane.xlu0 %874
        %876 = vadd.xlane.f32.xlu0 %v860
        %v877 = vpop.xlane.xlu0 %876
        %878 = vadd.xlane.f32.xlu0 %v861
        %v879 = vpop.xlane.xlu0 %878
        %880 = vadd.xlane.f32.xlu0 %v862
        %v881 = vpop.xlane.xlu0 %880
        %882 = vadd.xlane.f32.xlu0 %v863
        %v883 = vpop.xlane.xlu0 %882
        %884 = vadd.xlane.f32.xlu0 %v864
        %v885 = vpop.xlane.xlu0 %884
        %886 = vadd.xlane.f32.xlu0 %v865
        %v887 = vpop.xlane.xlu0 %886
        %888 = vadd.xlane.f32.xlu0 %v866
        %v889 = vpop.xlane.xlu0 %888
        %890 = vadd.xlane.f32.xlu0 %v867
        %v891 = vpop.xlane.xlu0 %890
        %892 = vadd.xlane.f32.xlu0 %v868
        %v893 = vpop.xlane.xlu0 %892
        %894 = vadd.xlane.f32.xlu0 %v869
        %v895 = vpop.xlane.xlu0 %894
        %v896 = vmul.f32 %v871, %v451
        %v897 = vmul.f32 %v873, %v451
        %v898 = vmul.f32 %v875, %v451
        %v899 = vmul.f32 %v877, %v451
        %v900 = vmul.f32 %v879, %v451
        %v901 = vmul.f32 %v881, %v451
        %v902 = vmul.f32 %v883, %v451
        %v903 = vmul.f32 %v885, %v451
        %v904 = vmul.f32 %v887, %v451
        %v905 = vmul.f32 %v889, %v451
        %v906 = vmul.f32 %v891, %v451
        %v907 = vmul.f32 %v893, %v451
        %v908 = vmul.f32 %v895, %v451
        %v909 = vadd.f32 %v896, 1e-05
        %v910 = vadd.f32 %v897, 1e-05
        %v911 = vadd.f32 %v898, 1e-05
        %v912 = vadd.f32 %v899, 1e-05
        %v913 = vadd.f32 %v900, 1e-05
        %v914 = vadd.f32 %v901, 1e-05
        %v915 = vadd.f32 %v902, 1e-05
        %v916 = vadd.f32 %v903, 1e-05
        %v917 = vadd.f32 %v904, 1e-05
        %v918 = vadd.f32 %v905, 1e-05
        %v919 = vadd.f32 %v906, 1e-05
        %v920 = vadd.f32 %v907, 1e-05
        %v921 = vadd.f32 %v908, 1e-05
        %v922 = vrsqrt.pop %v909
        %v923 = vrsqrt.pop %v910
        %v924 = vrsqrt.pop %v911
        %v925 = vrsqrt.pop %v912
        %v926 = vrsqrt.pop %v913
        %v927 = vrsqrt.pop %v914
        %v928 = vrsqrt.pop %v915
        %v929 = vrsqrt.pop %v916
        %v930 = vrsqrt.pop %v917
        %v931 = vrsqrt.pop %v918
        %v932 = vrsqrt.pop %v919
        %v933 = vrsqrt.pop %v920
        %v934 = vrsqrt.pop %v921
        %v935 = vmul.f32 %v844, %v922
        %v936 = vmul.f32 %v845, %v923
        %v937 = vmul.f32 %v846, %v924
        %v938 = vmul.f32 %v847, %v925
        %v939 = vmul.f32 %v848, %v926
        %v940 = vmul.f32 %v849, %v927
        %v941 = vmul.f32 %v850, %v928
        %v942 = vmul.f32 %v851, %v929
        %v943 = vmul.f32 %v852, %v930
        %v944 = vmul.f32 %v853, %v931
        %v945 = vmul.f32 %v854, %v932
        %v946 = vmul.f32 %v855, %v933
        %v947 = vmul.f32 %v856, %v934
        %v948 = vlaneseq
        %v949 = vshrl.u32 %v948, 7
        %v950 = vsub.s32 4, %v949
        %v951 = vrot.slane %v248, %v950
        %v952 = vmul.f32 %v935, %v951
        %v953 = vmul.f32 %v936, %v951
        %v954 = vmul.f32 %v937, %v951
        %v955 = vmul.f32 %v938, %v951
        %v956 = vmul.f32 %v939, %v951
        %v957 = vmul.f32 %v940, %v951
        %v958 = vmul.f32 %v941, %v951
        %v959 = vmul.f32 %v942, %v951
        %v960 = vmul.f32 %v943, %v951
        %v961 = vmul.f32 %v944, %v951
        %v962 = vmul.f32 %v945, %v951
        %v963 = vmul.f32 %v946, %v951
        %v964 = vmul.f32 %v947, %v951
        %v965 = vlaneseq
        %v966 = vshrl.u32 %v965, 7
        %v967 = vsub.s32 5, %v966
        %v968 = vrot.slane %v248, %v967
        %v969 = vadd.f32 %v952, %v968
        %v970 = vadd.f32 %v953, %v968
        %v971 = vadd.f32 %v954, %v968
        %v972 = vadd.f32 %v955, %v968
        %v973 = vadd.f32 %v956, %v968
        %v974 = vadd.f32 %v957, %v968
        %v975 = vadd.f32 %v958, %v968
        %v976 = vadd.f32 %v959, %v968
        %v977 = vadd.f32 %v960, %v968
        %v978 = vadd.f32 %v961, %v968
        %v979 = vadd.f32 %v962, %v968
        %v980 = vadd.f32 %v963, %v968
        %v981 = vadd.f32 %v964, %v968
        %v982 = vadd.f32 %v249, %v969
        %v983 = vadd.f32 %v250, %v970
        %v984 = vadd.f32 %v251, %v971
        %v985 = vadd.f32 %v252, %v972
        %v986 = vadd.f32 %v253, %v973
        %v987 = vadd.f32 %v254, %v974
        %v988 = vadd.f32 %v255, %v975
        %v989 = vadd.f32 %v256, %v976
        %v990 = vadd.f32 %v257, %v977
        %v991 = vadd.f32 %v258, %v978
        %v992 = vadd.f32 %v259, %v979
        %v993 = vadd.f32 %v260, %v980
        %v994 = vadd.f32 %v261, %v981
        %vm995 = vcmp.gt.f32.partialorder %v982, 0.0
        %vm996 = vcmp.gt.f32.partialorder %v983, 0.0
        %vm997 = vcmp.gt.f32.partialorder %v984, 0.0
        %vm998 = vcmp.gt.f32.partialorder %v985, 0.0
        %vm999 = vcmp.gt.f32.partialorder %v986, 0.0
        %vm1000 = vcmp.gt.f32.partialorder %v987, 0.0
        %vm1001 = vcmp.gt.f32.partialorder %v988, 0.0
        %vm1002 = vcmp.gt.f32.partialorder %v989, 0.0
        %vm1003 = vcmp.gt.f32.partialorder %v990, 0.0
        %vm1004 = vcmp.gt.f32.partialorder %v991, 0.0
        %vm1005 = vcmp.gt.f32.partialorder %v992, 0.0
        %vm1006 = vcmp.gt.f32.partialorder %v993, 0.0
        %vm1007 = vcmp.gt.f32.partialorder %v994, 0.0
        %v1008 = vmul.f32 %v982, 0.1
        %v1009 = vmul.f32 %v983, 0.1
        %v1010 = vmul.f32 %v984, 0.1
        %v1011 = vmul.f32 %v985, 0.1
        %v1012 = vmul.f32 %v986, 0.1
        %v1013 = vmul.f32 %v987, 0.1
        %v1014 = vmul.f32 %v988, 0.1
        %v1015 = vmul.f32 %v989, 0.1
        %v1016 = vmul.f32 %v990, 0.1
        %v1017 = vmul.f32 %v991, 0.1
        %v1018 = vmul.f32 %v992, 0.1
        %v1019 = vmul.f32 %v993, 0.1
        %v1020 = vmul.f32 %v994, 0.1
        %v1021 = vsel %vm995, %v982, %v1008
        %v1022 = vsel %vm996, %v983, %v1009
        %v1023 = vsel %vm997, %v984, %v1010
        %v1024 = vsel %vm998, %v985, %v1011
        %v1025 = vsel %vm999, %v986, %v1012
        %v1026 = vsel %vm1000, %v987, %v1013
        %v1027 = vsel %vm1001, %v988, %v1014
        %v1028 = vsel %vm1002, %v989, %v1015
        %v1029 = vsel %vm1003, %v990, %v1016
        %v1030 = vsel %vm1004, %v991, %v1017
        %v1031 = vsel %vm1005, %v992, %v1018
        %v1032 = vsel %vm1006, %v993, %v1019
        %v1033 = vsel %vm1007, %v994, %v1020
        %1034 = vst [vmem:[%s244] sm:$0xff] %v1021
        %1035 = vst [vmem:[%s244 + $0x8] sm:$0xff] %v1022
        %1036 = vst [vmem:[%s244 + $0x10] sm:$0xff] %v1023
        %1037 = vst [vmem:[%s244 + $0x18] sm:$0xff] %v1024
        %1038 = vst [vmem:[%s244 + $0x20] sm:$0xff] %v1025
        %1039 = vst [vmem:[%s244 + $0x28] sm:$0xff] %v1026
        %1040 = vst [vmem:[%s244 + $0x30] sm:$0xff] %v1027
        %1041 = vst [vmem:[%s244 + $0x38] sm:$0xff] %v1028
        %1042 = vst [vmem:[%s244 + $0x40] sm:$0xff] %v1029
        %1043 = vst [vmem:[%s244 + $0x48] sm:$0xff] %v1030
        %1044 = vst [vmem:[%s244 + $0x50] sm:$0xff] %v1031
        %1045 = vst [vmem:[%s244 + $0x58] sm:$0xff] %v1032
        %1046 = vst [vmem:[%s244 + $0x60] sm:$0xff] %v1033
        %s1047 = sand.u32 %s119, 1
        %s1048 = scalar_lea.sflag [#allocation4], %s1047
        %s1049 = sand.u32 %s119, 1
        %s1050 = smul.addr %s1049, 104
        %s1051 = scalar_lea.vmem [#allocation8], %s1050
        // Predicated region
        $region49: #{tpu_custom_call.1} parent=35 // pred_check
          %p1052 = pneg %p129
        $region50: #{tpu_custom_call.1} parent=35 // pred_check_branch
          %1054 = sbr.rel (%p1052) target = $region52
        $region51: #{tpu_custom_call.1} parent=35 // pred_region
          %s1055 = smul.u32 13, %s22
          %s1057 = ssub.s32 1664, 1664
          %1058 = vsyncadd %s1048, %s1057
          %s1059 = smul.addr %s1055, 128
          %s1060 = scalar_lea.hbm %s4, %s1059
          %s1061 = sshll.u32 %s1051, 4
          %s1062 = int_to_ptr.vmem [resolvable:$true] %s1061
          %1067 = dma.vmem_to_hbm [thread:$0]  %s1062, 1664, %s1060, %s1048, 128, 128, 8
        $region52: #{tpu_custom_call.1} parent=35 // pred_fallthru
          _
      $region36: #{tpu_custom_call.1} parent=5 // pred_fallthru
        _
      %p1068 = scmp.le.s32.totalorder 2, %s17
      // Predicated region
      $region53: #{tpu_custom_call.1} parent=5 // pred_check
        %p1069 = pneg %p1068
      $region54: #{tpu_custom_call.1} parent=5 // pred_check_branch
        %1071 = sbr.rel (%p1069) target = $region56
      $region55: #{tpu_custom_call.1} parent=5 // pred_region
        %s1072 = ssub.s32 %s17, 2
        // Predicated region
        $region57: #{tpu_custom_call.1} parent=55 // pred_check
          %p1073 = pneg %p135
        $region58: #{tpu_custom_call.1} parent=55 // pred_check_branch
          %1075 = sbr.rel (%p1073) target = $region60
        $region59: #{tpu_custom_call.1} parent=55 // pred_region
          %s1076 = sand.u32 %s120, 1
          %s1077 = scalar_lea.sflag [#allocation4], %s1076
          %s1078 = sand.u32 %s120, 1
          %s1079 = smul.addr %s1078, 104
          %s1080 = scalar_lea.vmem [#allocation8], %s1079
          %1081 = dma.done %s1077, 1664
        $region60: #{tpu_custom_call.1} parent=55 // pred_fallthru
          _
      $region56: #{tpu_custom_call.1} parent=5 // pred_fallthru
        _
    $region6: #{tpu_custom_call.1} parent=1 // loop_footer
      %s21 = sadd.s32 1, %s17
    $region7: #{tpu_custom_call.1} parent=1 // loop_footer_branch
      %16 = sbr.rel target = $region3
    $region8: #{tpu_custom_call.1} parent=1 // loop_exit
      _
    %1082 = vsyncpa [#allocation3], 1
    %s1083 = scalar_lea.sflag [#allocation3], 1
    %1084 = vsyncpa %s1083, 1
    %1085 = vsyncpa [#allocation6], 1
    %1086 = vsyncpa [#allocation4], 1
    %s1087 = scalar_lea.sflag [#allocation4], 1
    %1088 = vsyncpa %s1087, 1

</llo_original>
